<compile_context>
chip_gen: v7x
topology: tpu7x:2x2x1
jax: 0.10.0
libtpu: 0.0.40
codegen_flags: <defaults>
</compile_context>

<pallas_src>
import jax
import jax.numpy as jnp
from jax.experimental import pallas as pl
from jax.experimental.pallas import tpu as pltpu

EPS = 1e-08


def _make_max_min_kernel(splits):
    """Build a max_min-norm kernel for a static tuple of vector-axis ranges.

    splits: tuple of (lo, hi) ranges along the vector axis (dim 1); the
            max_min norm is computed independently per range (PyTorch splits a
            V=8 input into [3, 5]).
    """

    def kernel(vec_ref, w_ref, o_ref):
        # vec_ref: VMEM (TN, V, H); w_ref: VMEM (1, 1, H); o_ref: VMEM (TN, V, H)
        w = w_ref[...].astype(jnp.float32)                     # (1, 1, H)
        for lo, hi in splits:                                  # static unroll
            v = vec_ref[:, lo:hi, :].astype(jnp.float32)       # (TN, S, H)

            # dist = ||v|| over the vector axis (sublane reduce), clamp(min=EPS)
            d2 = jnp.sum(v * v, axis=1, keepdims=True)         # (TN, 1, H)
            dist = jnp.maximum(jnp.sqrt(d2), EPS)

            # per-row max/min over hidden channels (lane reduce)
            max_val = jnp.max(dist, axis=-1, keepdims=True)    # (TN, 1, 1)
            min_val = jnp.min(dist, axis=-1, keepdims=True)    # (TN, 1, 1)
            delta = max_val - min_val
            delta = jnp.where(delta == 0.0, jnp.ones_like(delta), delta)

            # Fused per-row factor: ((dist-min)/delta) * (1/dist) * weight.
            # Exact divides (not approx reciprocal) to hold 1e-5 tolerance.
            factor = ((dist - min_val) / delta) / dist * w     # (TN, 1, H)

            # Single full-size multiply per segment.
            o_ref[:, lo:hi, :] = (v * factor).astype(o_ref.dtype)

    return kernel


def _max_min_forward(vec, weight, *, tile_n=None,
                     vmem_block_bytes=2 * 1024 * 1024):
    """max_min norm + weight scaling over vec of shape (N, V, H), V in {3, 8}."""
    N, V, H = vec.shape
    if V == 3:
        splits = ((0, 3),)
    elif V == 8:
        splits = ((0, 3), (3, 8))
    else:
        raise NotImplementedError(
            "VecLayerNorm only supports vec.shape[1] in (3, 8)")

    if tile_n is None:
        itemsize = jnp.dtype(vec.dtype).itemsize
        row_bytes = V * H * itemsize
        # ~2 MiB per input block (x2 for output, x2 for double-buffering
        # => ~8 MiB resident: fits the 16 MiB v5e scoped-VMEM default).
        tn = max(8, (vmem_block_bytes // row_bytes) // 8 * 8)
    else:
        tn = tile_n
    tn = max(1, int(min(tn, N)))

    w3 = jnp.asarray(weight, dtype=jnp.float32).reshape(1, 1, H)

    kernel = _make_max_min_kernel(splits)
    return pl.pallas_call(
        kernel,
        out_shape=jax.ShapeDtypeStruct((N, V, H), vec.dtype),
        grid_spec=pl.GridSpec(
            grid=(pl.cdiv(N, tn),),
            in_specs=[
                pl.BlockSpec((tn, V, H), lambda i: (i, 0, 0)),
                pl.BlockSpec((1, 1, H), lambda i: (0, 0, 0)),
            ],
            out_specs=pl.BlockSpec((tn, V, H), lambda i: (i, 0, 0)),
        ),
        compiler_params=pltpu.CompilerParams(
            dimension_semantics=("parallel",)),
    )(vec, w3)


class VecLayerNormPallas:
    """JAX/Pallas port of VecLayerNorm (forward only)."""

    def __init__(self, hidden_channels, trainable=True, norm_type="max_min"):
        del trainable  # forward-only; gradients not needed here
        self.hidden_channels = hidden_channels
        self.norm_type = norm_type
        # reset_parameters(): nn.init.ones_(weight)
        self.weight = jnp.ones((hidden_channels,), dtype=jnp.float32)
        # TODO(synk): 'rms' norm variant not implemented (module default is 'max_min').

    def __call__(self, vec):
        if vec.shape[1] not in (3, 8):
            raise NotImplementedError(
                "VecLayerNorm only supports vec.shape[1] in (3, 8)")
        if self.norm_type == "max_min":
            return _max_min_forward(vec, self.weight)
        elif self.norm_type == "none":
            # none_norm: passthrough, then forward multiplies by weight
            return vec * self.weight.reshape(1, 1, -1)
        else:
            raise NotImplementedError(self.norm_type)


# ---------------------- pure-JAX reference (for checking) ----------------------
def _ref_max_min_norm(vec):
    dist = jnp.sqrt(jnp.sum(vec * vec, axis=1, keepdims=True))   # (N,1,H)
    all_zero = jnp.all(dist == 0)
    dist = jnp.maximum(dist, EPS)
    direct = vec / dist
    max_val = jnp.max(dist, axis=-1)                             # (N,1)
    min_val = jnp.min(dist, axis=-1)
    delta = (max_val - min_val).reshape(-1)
    delta = jnp.where(delta == 0, jnp.ones_like(delta), delta)
    dist_n = (dist - min_val.reshape(-1, 1, 1)) / delta.reshape(-1, 1, 1)
    out = dist_n * direct
    return jnp.where(all_zero, jnp.zeros_like(vec), out)


def _ref_forward(vec, weight):
    if vec.shape[1] == 3:
        out = _ref_max_min_norm(vec)
    else:
        v1 = _ref_max_min_norm(vec[:, :3, :])
        v2 = _ref_max_min_norm(vec[:, 3:, :])
        out = jnp.concatenate([v1, v2], axis=1)
    return out * weight.reshape(1, 1, -1)


if __name__ == "__main__":
    key = jax.random.PRNGKey(0)
    H = 32
    module = VecLayerNormPallas(hidden_channels=H, trainable=True,
                                norm_type="max_min")

    # Case 1: V = 8 (split [3, 5]) — the common TorchMD-Net config.
    vec8 = jax.random.normal(key, (16, 8, H), dtype=jnp.float32)
    out8 = jax.block_until_ready(module(vec8))
    ref8 = _ref_forward(vec8, module.weight)
    assert out8.shape == vec8.shape
    assert jnp.allclose(out8, ref8, atol=1e-5, rtol=1e-5), (
        f"V=8 max abs err = {jnp.max(jnp.abs(out8 - ref8))}")

    # Case 2: V = 3, ragged N (not a multiple of the tile).
    vec3 = jax.random.normal(jax.random.PRNGKey(1), (13, 3, H),
                             dtype=jnp.float32)
    out3 = jax.block_until_ready(module(vec3))
    ref3 = _ref_forward(vec3, module.weight)
    assert out3.shape == vec3.shape
    assert jnp.allclose(out3, ref3, atol=1e-5, rtol=1e-5), (
        f"V=3 max abs err = {jnp.max(jnp.abs(out3 - ref3))}")

    # Case 3: all-zero input — PyTorch early-returns zeros; the EPS clamp
    # makes the flag-free kernel produce exactly zeros as well.
    vec0 = jnp.zeros((8, 8, H), dtype=jnp.float32)
    out0 = jax.block_until_ready(module(vec0))
    assert jnp.allclose(out0, jnp.zeros_like(vec0)), "all-zero case not zero"

    print("KERNEL_OK")
</pallas_src>

<mosaic_0001>
module attributes {stable_mosaic.version = 11 : i64} {
  func.func @kernel(%arg0: i32, %arg1: memref<16x8x32xf32, #tpu.memory_space<vmem>>, %arg2: memref<1x1x32xf32, #tpu.memory_space<vmem>>, %arg3: memref<16x8x32xf32, #tpu.memory_space<vmem>>) attributes {dimension_semantics = [#tpu.dimension_semantics<parallel>], iteration_bounds = array<i64: 1>, scalar_prefetch = 0 : i64, scratch_operands = 0 : i64, tpu.core_type = #tpu.core_type<tc>, window_params = [{transform_indices = @transform_0, window_bounds = array<i64: 16, 8, 32>}, {pipeline_mode = #tpu.pipeline_mode<synchronous>, transform_indices = @transform_1, window_bounds = array<i64: 1, 1, 32>}, {transform_indices = @transform_2, window_bounds = array<i64: 16, 8, 32>}]} {
    %c0 = arith.constant 0 : index
    %c0_0 = arith.constant 0 : index
    %c0_1 = arith.constant 0 : index
    %0 = vector.load %arg2[%c0, %c0_0, %c0_1] : memref<1x1x32xf32, #tpu.memory_space<vmem>>, vector<1x1x32xf32>
    %c0_2 = arith.constant 0 : index
    %c0_3 = arith.constant 0 : index
    %c0_4 = arith.constant 0 : index
    %1 = vector.load %arg1[%c0_2, %c0_3, %c0_4] : memref<16x8x32xf32, #tpu.memory_space<vmem>>, vector<16x3x32xf32>
    %2 = arith.mulf %1, %1 : vector<16x3x32xf32>
    %cst = arith.constant dense<0.000000e+00> : vector<16x32xf32>
    %3 = vector.multi_reduction <add>, %2, %cst [1] : vector<16x3x32xf32> to vector<16x32xf32>
    %4 = vector.shape_cast %3 : vector<16x32xf32> to vector<16x1x32xf32>
    %5 = math.sqrt %4 : vector<16x1x32xf32>
    %cst_5 = arith.constant 9.99999993E-9 : f32
    %6 = vector.broadcast %cst_5 : f32 to vector<16x1x32xf32>
    %7 = arith.maximumf %5, %6 : vector<16x1x32xf32>
    %cst_6 = arith.constant dense<0xFF800000> : vector<16x1xf32>
    %8 = vector.multi_reduction <maximumf>, %7, %cst_6 [2] : vector<16x1x32xf32> to vector<16x1xf32>
    %9 = vector.shape_cast %8 : vector<16x1xf32> to vector<16x1x1xf32>
    %cst_7 = arith.constant dense<0x7F800000> : vector<16x1xf32>
    %10 = vector.multi_reduction <minimumf>, %7, %cst_7 [2] : vector<16x1x32xf32> to vector<16x1xf32>
    %11 = vector.shape_cast %10 : vector<16x1xf32> to vector<16x1x1xf32>
    %12 = arith.subf %9, %11 : vector<16x1x1xf32>
    %cst_8 = arith.constant 0.000000e+00 : f32
    %13 = vector.broadcast %cst_8 : f32 to vector<16x1x1xf32>
    %14 = arith.cmpf oeq, %12, %13 : vector<16x1x1xf32>
    %cst_9 = arith.constant 1.000000e+00 : f32
    %15 = vector.broadcast %cst_9 : f32 to vector<16x1x1xf32>
    %16 = arith.select %14, %15, %12 : vector<16x1x1xi1>, vector<16x1x1xf32>
    %17 = vector.broadcast %11 : vector<16x1x1xf32> to vector<16x1x32xf32>
    %18 = arith.subf %7, %17 : vector<16x1x32xf32>
    %19 = vector.broadcast %16 : vector<16x1x1xf32> to vector<16x1x32xf32>
    %20 = arith.divf %18, %19 : vector<16x1x32xf32>
    %21 = arith.divf %20, %7 : vector<16x1x32xf32>
    %22 = vector.broadcast %0 : vector<1x1x32xf32> to vector<16x1x32xf32>
    %23 = arith.mulf %21, %22 : vector<16x1x32xf32>
    %24 = vector.broadcast %23 : vector<16x1x32xf32> to vector<16x3x32xf32>
    %25 = arith.mulf %1, %24 : vector<16x3x32xf32>
    %c0_10 = arith.constant 0 : index
    %c0_11 = arith.constant 0 : index
    %c0_12 = arith.constant 0 : index
    %26 = vector.load %arg3[%c0_10, %c0_11, %c0_12] : memref<16x8x32xf32, #tpu.memory_space<vmem>>, vector<16x3x32xf32>
    tpu.vector_store %arg3[%c0_10, %c0_11, %c0_12], %25 {strides = array<i32>} : memref<16x8x32xf32, #tpu.memory_space<vmem>>, vector<16x3x32xf32>,
    %c0_13 = arith.constant 0 : index
    %c3 = arith.constant 3 : index
    %c0_14 = arith.constant 0 : index
    %27 = vector.load %arg1[%c0_13, %c3, %c0_14] : memref<16x8x32xf32, #tpu.memory_space<vmem>>, vector<16x5x32xf32>
    %28 = arith.mulf %27, %27 : vector<16x5x32xf32>
    %cst_15 = arith.constant dense<0.000000e+00> : vector<16x32xf32>
    %29 = vector.multi_reduction <add>, %28, %cst_15 [1] : vector<16x5x32xf32> to vector<16x32xf32>
    %30 = vector.shape_cast %29 : vector<16x32xf32> to vector<16x1x32xf32>
    %31 = math.sqrt %30 : vector<16x1x32xf32>
    %cst_16 = arith.constant 9.99999993E-9 : f32
    %32 = vector.broadcast %cst_16 : f32 to vector<16x1x32xf32>
    %33 = arith.maximumf %31, %32 : vector<16x1x32xf32>
    %cst_17 = arith.constant dense<0xFF800000> : vector<16x1xf32>
    %34 = vector.multi_reduction <maximumf>, %33, %cst_17 [2] : vector<16x1x32xf32> to vector<16x1xf32>
    %35 = vector.shape_cast %34 : vector<16x1xf32> to vector<16x1x1xf32>
    %cst_18 = arith.constant dense<0x7F800000> : vector<16x1xf32>
    %36 = vector.multi_reduction <minimumf>, %33, %cst_18 [2] : vector<16x1x32xf32> to vector<16x1xf32>
    %37 = vector.shape_cast %36 : vector<16x1xf32> to vector<16x1x1xf32>
    %38 = arith.subf %35, %37 : vector<16x1x1xf32>
    %cst_19 = arith.constant 0.000000e+00 : f32
    %39 = vector.broadcast %cst_19 : f32 to vector<16x1x1xf32>
    %40 = arith.cmpf oeq, %38, %39 : vector<16x1x1xf32>
    %cst_20 = arith.constant 1.000000e+00 : f32
    %41 = vector.broadcast %cst_20 : f32 to vector<16x1x1xf32>
    %42 = arith.select %40, %41, %38 : vector<16x1x1xi1>, vector<16x1x1xf32>
    %43 = vector.broadcast %37 : vector<16x1x1xf32> to vector<16x1x32xf32>
    %44 = arith.subf %33, %43 : vector<16x1x32xf32>
    %45 = vector.broadcast %42 : vector<16x1x1xf32> to vector<16x1x32xf32>
    %46 = arith.divf %44, %45 : vector<16x1x32xf32>
    %47 = arith.divf %46, %33 : vector<16x1x32xf32>
    %48 = vector.broadcast %0 : vector<1x1x32xf32> to vector<16x1x32xf32>
    %49 = arith.mulf %47, %48 : vector<16x1x32xf32>
    %50 = vector.broadcast %49 : vector<16x1x32xf32> to vector<16x5x32xf32>
    %51 = arith.mulf %27, %50 : vector<16x5x32xf32>
    %c0_21 = arith.constant 0 : index
    %c3_22 = arith.constant 3 : index
    %c0_23 = arith.constant 0 : index
    %52 = vector.load %arg3[%c0_21, %c3_22, %c0_23] : memref<16x8x32xf32, #tpu.memory_space<vmem>>, vector<16x5x32xf32>
    tpu.vector_store %arg3[%c0_21, %c3_22, %c0_23], %51 {strides = array<i32>} : memref<16x8x32xf32, #tpu.memory_space<vmem>>, vector<16x5x32xf32>,
    return
  }
  func.func @transform_0(%arg0: i32) -> (i32, i32, i32) {
    %c0_i32 = arith.constant 0 : i32
    %c0_i32_0 = arith.constant 0 : i32
    %c0_i32_1 = arith.constant 0 : i32
    return %arg0, %c0_i32, %c0_i32_0 : i32, i32, i32
  }
  func.func @transform_1(%arg0: i32) -> (i32, i32, i32) {
    %c0_i32 = arith.constant 0 : i32
    %c0_i32_0 = arith.constant 0 : i32
    %c0_i32_1 = arith.constant 0 : i32
    %c0_i32_2 = arith.constant 0 : i32
    return %c0_i32, %c0_i32_0, %c0_i32_1 : i32, i32, i32
  }
  func.func @transform_2(%arg0: i32) -> (i32, i32, i32) {
    %c0_i32 = arith.constant 0 : i32
    %c0_i32_0 = arith.constant 0 : i32
    %c0_i32_1 = arith.constant 0 : i32
    return %arg0, %c0_i32, %c0_i32_0 : i32, i32, i32
  }
}

</mosaic_0001>

<llo_original>
// kernel: tpu_custom_call.1
$region0: #{tpu_custom_call.1}
  #allocation0 [shape = 'u32[]', space=smem, size = 0x4, offset = 0x4, fixed_abs, tag = 'smem constant byte address 0x4 - core index']
  #allocation1 [shape = 'u32[144,128]{1,0:T(1,128)}', space=vmem, size = 0x12000, scoped, tag = 'internal scratch']
  %s0 = inlined_call_operand.hbm [shape: f32[16,8,32], index: 0, kind: input, shape index: {}]
  %s1 = inlined_call_operand.vmem [shape: f32[1,1,32], index: 1, kind: input, shape index: {}]
  %s2 = inlined_call_operand.hbm [shape: f32[16,8,32], index: 2, kind: output, shape index: {}]
  %s3 = sld [smem:[#allocation0]]
  $region22: #{tpu_custom_call.1} parent=0
    _
  %s5 = ssub.s32 1, %s3
  %s6 = scalar_select 0, %s5, %s3
  $region1: #{tpu_custom_call.1} parent=0
    #allocation2 [shape = 'u8[65536]{0}', space=vmem, size = 0x10000, scoped, tag = 'input window, operand 0, single buffered']
    #allocation3 [shape = 's32[1]{0}', space=sflag, size = 0x4, scoped, tag = 'scoped memory for tpu_custom_call.1']
    #allocation4 [shape = 's32[1]{0}', space=sflag, size = 0x4, scoped, tag = 'scoped memory for tpu_custom_call.1']
    #allocation5 [shape = 'u8[65536]{0}', space=vmem, size = 0x10000, scoped, tag = 'output window, operand 0, single buffered']
    %7 = vsyncpa [#allocation3], 0
    %8 = vsyncpa [#allocation4], 0
    // Predicated region
    $region2: #{tpu_custom_call.1} parent=1 // pred_check
      _
    $region3: #{tpu_custom_call.1} parent=1 // pred_check_branch
      %10 = sbr.rel (0) target = $region5
    $region4: #{tpu_custom_call.1} parent=1 // pred_region
      %s12 = ssub.s32 2048, 2048
      %13 = vsyncadd [#allocation3], %s12
      %s14 = sshll.u32 [#allocation2], 4
      %s15 = int_to_ptr.vmem [resolvable:$true] %s14
      %20 = dma.hbm_to_vmem [thread:$0]  %s0, 2048, %s15, [#allocation3], 128, 128, 8
    $region5: #{tpu_custom_call.1} parent=1 // pred_fallthru
      _
    // Predicated region
    $region6: #{tpu_custom_call.1} parent=1 // pred_check
      _
    $region7: #{tpu_custom_call.1} parent=1 // pred_check_branch
      %22 = sbr.rel (0) target = $region9
    $region8: #{tpu_custom_call.1} parent=1 // pred_region
      _
    $region9: #{tpu_custom_call.1} parent=1 // pred_fallthru
      _
    // Predicated region
    $region10: #{tpu_custom_call.1} parent=1 // pred_check
      _
    $region11: #{tpu_custom_call.1} parent=1 // pred_check_branch
      %24 = sbr.rel (0) target = $region13
    $region12: #{tpu_custom_call.1} parent=1 // pred_region
      %25 = dma.done [#allocation3], 2048
    $region13: #{tpu_custom_call.1} parent=1 // pred_fallthru
      _
    %v26 = vld [vmem:[%s1] sm:$0x1]
    %v27 = vld [vmem:[#allocation2] sm:$0x7]
    %v28 = vld [vmem:[#allocation2 + $0x8] sm:$0x7]
    %v29 = vld [vmem:[#allocation2 + $0x10] sm:$0x7]
    %v30 = vld [vmem:[#allocation2 + $0x18] sm:$0x7]
    %v31 = vld [vmem:[#allocation2 + $0x20] sm:$0x7]
    %v32 = vld [vmem:[#allocation2 + $0x28] sm:$0x7]
    %v33 = vld [vmem:[#allocation2 + $0x30] sm:$0x7]
    %v34 = vld [vmem:[#allocation2 + $0x38] sm:$0x7]
    %v35 = vld [vmem:[#allocation2 + $0x40] sm:$0x7]
    %v36 = vld [vmem:[#allocation2 + $0x48] sm:$0x7]
    %v37 = vld [vmem:[#allocation2 + $0x50] sm:$0x7]
    %v38 = vld [vmem:[#allocation2 + $0x58] sm:$0x7]
    %v39 = vld [vmem:[#allocation2 + $0x60] sm:$0x7]
    %v40 = vld [vmem:[#allocation2 + $0x68] sm:$0x7]
    %v41 = vld [vmem:[#allocation2 + $0x70] sm:$0x7]
    %v42 = vld [vmem:[#allocation2 + $0x78] sm:$0x7]
    %v43 = vmul.f32 %v27, %v27
    %v44 = vmul.f32 %v28, %v28
    %v45 = vmul.f32 %v29, %v29
    %v46 = vmul.f32 %v30, %v30
    %v47 = vmul.f32 %v31, %v31
    %v48 = vmul.f32 %v32, %v32
    %v49 = vmul.f32 %v33, %v33
    %v50 = vmul.f32 %v34, %v34
    %v51 = vmul.f32 %v35, %v35
    %v52 = vmul.f32 %v36, %v36
    %v53 = vmul.f32 %v37, %v37
    %v54 = vmul.f32 %v38, %v38
    %v55 = vmul.f32 %v39, %v39
    %v56 = vmul.f32 %v40, %v40
    %v57 = vmul.f32 %v41, %v41
    %v58 = vmul.f32 %v42, %v42
    %vm59 = vcmask 256000
    %v60 = vsel %vm59, %v43, 0.0
    %v61 = vrot.slane %v60, 4
    %v62 = vadd.f32 %v60, %v61
    %v63 = vrot.slane %v62, 2
    %v64 = vadd.f32 %v62, %v63
    %v65 = vrot.slane %v64, 1
    %v66 = vadd.f32 %v64, %v65
    %v67 = vsel %vm59, %v44, 0.0
    %v68 = vrot.slane %v67, 4
    %v69 = vadd.f32 %v67, %v68
    %v70 = vrot.slane %v69, 2
    %v71 = vadd.f32 %v69, %v70
    %v72 = vrot.slane %v71, 1
    %v73 = vadd.f32 %v71, %v72
    %v74 = vsel %vm59, %v45, 0.0
    %v75 = vrot.slane %v74, 4
    %v76 = vadd.f32 %v74, %v75
    %v77 = vrot.slane %v76, 2
    %v78 = vadd.f32 %v76, %v77
    %v79 = vrot.slane %v78, 1
    %v80 = vadd.f32 %v78, %v79
    %v81 = vsel %vm59, %v46, 0.0
    %v82 = vrot.slane %v81, 4
    %v83 = vadd.f32 %v81, %v82
    %v84 = vrot.slane %v83, 2
    %v85 = vadd.f32 %v83, %v84
    %v86 = vrot.slane %v85, 1
    %v87 = vadd.f32 %v85, %v86
    %v88 = vsel %vm59, %v47, 0.0
    %v89 = vrot.slane %v88, 4
    %v90 = vadd.f32 %v88, %v89
    %v91 = vrot.slane %v90, 2
    %v92 = vadd.f32 %v90, %v91
    %v93 = vrot.slane %v92, 1
    %v94 = vadd.f32 %v92, %v93
    %v95 = vsel %vm59, %v48, 0.0
    %v96 = vrot.slane %v95, 4
    %v97 = vadd.f32 %v95, %v96
    %v98 = vrot.slane %v97, 2
    %v99 = vadd.f32 %v97, %v98
    %v100 = vrot.slane %v99, 1
    %v101 = vadd.f32 %v99, %v100
    %v102 = vsel %vm59, %v49, 0.0
    %v103 = vrot.slane %v102, 4
    %v104 = vadd.f32 %v102, %v103
    %v105 = vrot.slane %v104, 2
    %v106 = vadd.f32 %v104, %v105
    %v107 = vrot.slane %v106, 1
    %v108 = vadd.f32 %v106, %v107
    %v109 = vsel %vm59, %v50, 0.0
    %v110 = vrot.slane %v109, 4
    %v111 = vadd.f32 %v109, %v110
    %v112 = vrot.slane %v111, 2
    %v113 = vadd.f32 %v111, %v112
    %v114 = vrot.slane %v113, 1
    %v115 = vadd.f32 %v113, %v114
    %v116 = vsel %vm59, %v51, 0.0
    %v117 = vrot.slane %v116, 4
    %v118 = vadd.f32 %v116, %v117
    %v119 = vrot.slane %v118, 2
    %v120 = vadd.f32 %v118, %v119
    %v121 = vrot.slane %v120, 1
    %v122 = vadd.f32 %v120, %v121
    %v123 = vsel %vm59, %v52, 0.0
    %v124 = vrot.slane %v123, 4
    %v125 = vadd.f32 %v123, %v124
    %v126 = vrot.slane %v125, 2
    %v127 = vadd.f32 %v125, %v126
    %v128 = vrot.slane %v127, 1
    %v129 = vadd.f32 %v127, %v128
    %v130 = vsel %vm59, %v53, 0.0
    %v131 = vrot.slane %v130, 4
    %v132 = vadd.f32 %v130, %v131
    %v133 = vrot.slane %v132, 2
    %v134 = vadd.f32 %v132, %v133
    %v135 = vrot.slane %v134, 1
    %v136 = vadd.f32 %v134, %v135
    %v137 = vsel %vm59, %v54, 0.0
    %v138 = vrot.slane %v137, 4
    %v139 = vadd.f32 %v137, %v138
    %v140 = vrot.slane %v139, 2
    %v141 = vadd.f32 %v139, %v140
    %v142 = vrot.slane %v141, 1
    %v143 = vadd.f32 %v141, %v142
    %v144 = vsel %vm59, %v55, 0.0
    %v145 = vrot.slane %v144, 4
    %v146 = vadd.f32 %v144, %v145
    %v147 = vrot.slane %v146, 2
    %v148 = vadd.f32 %v146, %v147
    %v149 = vrot.slane %v148, 1
    %v150 = vadd.f32 %v148, %v149
    %v151 = vsel %vm59, %v56, 0.0
    %v152 = vrot.slane %v151, 4
    %v153 = vadd.f32 %v151, %v152
    %v154 = vrot.slane %v153, 2
    %v155 = vadd.f32 %v153, %v154
    %v156 = vrot.slane %v155, 1
    %v157 = vadd.f32 %v155, %v156
    %v158 = vsel %vm59, %v57, 0.0
    %v159 = vrot.slane %v158, 4
    %v160 = vadd.f32 %v158, %v159
    %v161 = vrot.slane %v160, 2
    %v162 = vadd.f32 %v160, %v161
    %v163 = vrot.slane %v162, 1
    %v164 = vadd.f32 %v162, %v163
    %v165 = vsel %vm59, %v58, 0.0
    %v166 = vrot.slane %v165, 4
    %v167 = vadd.f32 %v165, %v166
    %v168 = vrot.slane %v167, 2
    %v169 = vadd.f32 %v167, %v168
    %v170 = vrot.slane %v169, 1
    %v171 = vadd.f32 %v169, %v170
    %v172 = vrsqrt.pop %v66
    %v173 = vmul.f32 %v66, %v172
    %vm174 = vcmp.eq.f32.partialorder %v66, inf
    %v175 = vsel %vm174, %v66, %v173
    %vm176 = vcmp.eq.f32.partialorder %v66, 0.0
    %v177 = vand.u32 %v66, 2147483648
    %v178 = vsel %vm176, %v177, %v175
    %v179 = vrsqrt.pop %v73
    %v180 = vmul.f32 %v73, %v179
    %vm181 = vcmp.eq.f32.partialorder %v73, inf
    %v182 = vsel %vm181, %v73, %v180
    %vm183 = vcmp.eq.f32.partialorder %v73, 0.0
    %v184 = vand.u32 %v73, 2147483648
    %v185 = vsel %vm183, %v184, %v182
    %v186 = vrsqrt.pop %v80
    %v187 = vmul.f32 %v80, %v186
    %vm188 = vcmp.eq.f32.partialorder %v80, inf
    %v189 = vsel %vm188, %v80, %v187
    %vm190 = vcmp.eq.f32.partialorder %v80, 0.0
    %v191 = vand.u32 %v80, 2147483648
    %v192 = vsel %vm190, %v191, %v189
    %v193 = vrsqrt.pop %v87
    %v194 = vmul.f32 %v87, %v193
    %vm195 = vcmp.eq.f32.partialorder %v87, inf
    %v196 = vsel %vm195, %v87, %v194
    %vm197 = vcmp.eq.f32.partialorder %v87, 0.0
    %v198 = vand.u32 %v87, 2147483648
    %v199 = vsel %vm197, %v198, %v196
    %v200 = vrsqrt.pop %v94
    %v201 = vmul.f32 %v94, %v200
    %vm202 = vcmp.eq.f32.partialorder %v94, inf
    %v203 = vsel %vm202, %v94, %v201
    %vm204 = vcmp.eq.f32.partialorder %v94, 0.0
    %v205 = vand.u32 %v94, 2147483648
    %v206 = vsel %vm204, %v205, %v203
    %v207 = vrsqrt.pop %v101
    %v208 = vmul.f32 %v101, %v207
    %vm209 = vcmp.eq.f32.partialorder %v101, inf
    %v210 = vsel %vm209, %v101, %v208
    %vm211 = vcmp.eq.f32.partialorder %v101, 0.0
    %v212 = vand.u32 %v101, 2147483648
    %v213 = vsel %vm211, %v212, %v210
    %v214 = vrsqrt.pop %v108
    %v215 = vmul.f32 %v108, %v214
    %vm216 = vcmp.eq.f32.partialorder %v108, inf
    %v217 = vsel %vm216, %v108, %v215
    %vm218 = vcmp.eq.f32.partialorder %v108, 0.0
    %v219 = vand.u32 %v108, 2147483648
    %v220 = vsel %vm218, %v219, %v217
    %v221 = vrsqrt.pop %v115
    %v222 = vmul.f32 %v115, %v221
    %vm223 = vcmp.eq.f32.partialorder %v115, inf
    %v224 = vsel %vm223, %v115, %v222
    %vm225 = vcmp.eq.f32.partialorder %v115, 0.0
    %v226 = vand.u32 %v115, 2147483648
    %v227 = vsel %vm225, %v226, %v224
    %v228 = vrsqrt.pop %v122
    %v229 = vmul.f32 %v122, %v228
    %vm230 = vcmp.eq.f32.partialorder %v122, inf
    %v231 = vsel %vm230, %v122, %v229
    %vm232 = vcmp.eq.f32.partialorder %v122, 0.0
    %v233 = vand.u32 %v122, 2147483648
    %v234 = vsel %vm232, %v233, %v231
    %v235 = vrsqrt.pop %v129
    %v236 = vmul.f32 %v129, %v235
    %vm237 = vcmp.eq.f32.partialorder %v129, inf
    %v238 = vsel %vm237, %v129, %v236
    %vm239 = vcmp.eq.f32.partialorder %v129, 0.0
    %v240 = vand.u32 %v129, 2147483648
    %v241 = vsel %vm239, %v240, %v238
    %v242 = vrsqrt.pop %v136
    %v243 = vmul.f32 %v136, %v242
    %vm244 = vcmp.eq.f32.partialorder %v136, inf
    %v245 = vsel %vm244, %v136, %v243
    %vm246 = vcmp.eq.f32.partialorder %v136, 0.0
    %v247 = vand.u32 %v136, 2147483648
    %v248 = vsel %vm246, %v247, %v245
    %v249 = vrsqrt.pop %v143
    %v250 = vmul.f32 %v143, %v249
    %vm251 = vcmp.eq.f32.partialorder %v143, inf
    %v252 = vsel %vm251, %v143, %v250
    %vm253 = vcmp.eq.f32.partialorder %v143, 0.0
    %v254 = vand.u32 %v143, 2147483648
    %v255 = vsel %vm253, %v254, %v252
    %v256 = vrsqrt.pop %v150
    %v257 = vmul.f32 %v150, %v256
    %vm258 = vcmp.eq.f32.partialorder %v150, inf
    %v259 = vsel %vm258, %v150, %v257
    %vm260 = vcmp.eq.f32.partialorder %v150, 0.0
    %v261 = vand.u32 %v150, 2147483648
    %v262 = vsel %vm260, %v261, %v259
    %v263 = vrsqrt.pop %v157
    %v264 = vmul.f32 %v157, %v263
    %vm265 = vcmp.eq.f32.partialorder %v157, inf
    %v266 = vsel %vm265, %v157, %v264
    %vm267 = vcmp.eq.f32.partialorder %v157, 0.0
    %v268 = vand.u32 %v157, 2147483648
    %v269 = vsel %vm267, %v268, %v266
    %v270 = vrsqrt.pop %v164
    %v271 = vmul.f32 %v164, %v270
    %vm272 = vcmp.eq.f32.partialorder %v164, inf
    %v273 = vsel %vm272, %v164, %v271
    %vm274 = vcmp.eq.f32.partialorder %v164, 0.0
    %v275 = vand.u32 %v164, 2147483648
    %v276 = vsel %vm274, %v275, %v273
    %v277 = vrsqrt.pop %v171
    %v278 = vmul.f32 %v171, %v277
    %vm279 = vcmp.eq.f32.partialorder %v171, inf
    %v280 = vsel %vm279, %v171, %v278
    %vm281 = vcmp.eq.f32.partialorder %v171, 0.0
    %v282 = vand.u32 %v171, 2147483648
    %v283 = vsel %vm281, %v282, %v280
    %v284 = vmax.f32 %v178, 1e-08
    %v285 = vmax.f32 %v185, 1e-08
    %v286 = vmax.f32 %v192, 1e-08
    %v287 = vmax.f32 %v199, 1e-08
    %v288 = vmax.f32 %v206, 1e-08
    %v289 = vmax.f32 %v213, 1e-08
    %v290 = vmax.f32 %v220, 1e-08
    %v291 = vmax.f32 %v227, 1e-08
    %v292 = vmax.f32 %v234, 1e-08
    %v293 = vmax.f32 %v241, 1e-08
    %v294 = vmax.f32 %v248, 1e-08
    %v295 = vmax.f32 %v255, 1e-08
    %v296 = vmax.f32 %v262, 1e-08
    %v297 = vmax.f32 %v269, 1e-08
    %v298 = vmax.f32 %v276, 1e-08
    %v299 = vmax.f32 %v283, 1e-08
    %vm300 = vcmask 261120
    %v301 = vsel %vm300, %v284, -inf
    %302 = vmax.xlane.f32.xlu0 %v301
    %v303 = vpop.xlane.xlu0 %302
    %v304 = vsel %vm300, %v285, -inf
    %305 = vmax.xlane.f32.xlu0 %v304
    %v306 = vpop.xlane.xlu0 %305
    %v307 = vsel %vm300, %v286, -inf
    %308 = vmax.xlane.f32.xlu0 %v307
    %v309 = vpop.xlane.xlu0 %308
    %v310 = vsel %vm300, %v287, -inf
    %311 = vmax.xlane.f32.xlu0 %v310
    %v312 = vpop.xlane.xlu0 %311
    %v313 = vsel %vm300, %v288, -inf
    %314 = vmax.xlane.f32.xlu0 %v313
    %v315 = vpop.xlane.xlu0 %314
    %v316 = vsel %vm300, %v289, -inf
    %317 = vmax.xlane.f32.xlu0 %v316
    %v318 = vpop.xlane.xlu0 %317
    %v319 = vsel %vm300, %v290, -inf
    %320 = vmax.xlane.f32.xlu0 %v319
    %v321 = vpop.xlane.xlu0 %320
    %v322 = vsel %vm300, %v291, -inf
    %323 = vmax.xlane.f32.xlu0 %v322
    %v324 = vpop.xlane.xlu0 %323
    %v325 = vsel %vm300, %v292, -inf
    %326 = vmax.xlane.f32.xlu0 %v325
    %v327 = vpop.xlane.xlu0 %326
    %v328 = vsel %vm300, %v293, -inf
    %329 = vmax.xlane.f32.xlu0 %v328
    %v330 = vpop.xlane.xlu0 %329
    %v331 = vsel %vm300, %v294, -inf
    %332 = vmax.xlane.f32.xlu0 %v331
    %v333 = vpop.xlane.xlu0 %332
    %v334 = vsel %vm300, %v295, -inf
    %335 = vmax.xlane.f32.xlu0 %v334
    %v336 = vpop.xlane.xlu0 %335
    %v337 = vsel %vm300, %v296, -inf
    %338 = vmax.xlane.f32.xlu0 %v337
    %v339 = vpop.xlane.xlu0 %338
    %v340 = vsel %vm300, %v297, -inf
    %341 = vmax.xlane.f32.xlu0 %v340
    %v342 = vpop.xlane.xlu0 %341
    %v343 = vsel %vm300, %v298, -inf
    %344 = vmax.xlane.f32.xlu0 %v343
    %v345 = vpop.xlane.xlu0 %344
    %v346 = vsel %vm300, %v299, -inf
    %347 = vmax.xlane.f32.xlu0 %v346
    %v348 = vpop.xlane.xlu0 %347
    %v349 = vsel %vm300, %v284, inf
    %350 = vmin.xlane.f32.xlu0 %v349
    %v351 = vpop.xlane.xlu0 %350
    %v352 = vsel %vm300, %v285, inf
    %353 = vmin.xlane.f32.xlu0 %v352
    %v354 = vpop.xlane.xlu0 %353
    %v355 = vsel %vm300, %v286, inf
    %356 = vmin.xlane.f32.xlu0 %v355
    %v357 = vpop.xlane.xlu0 %356
    %v358 = vsel %vm300, %v287, inf
    %359 = vmin.xlane.f32.xlu0 %v358
    %v360 = vpop.xlane.xlu0 %359
    %v361 = vsel %vm300, %v288, inf
    %362 = vmin.xlane.f32.xlu0 %v361
    %v363 = vpop.xlane.xlu0 %362
    %v364 = vsel %vm300, %v289, inf
    %365 = vmin.xlane.f32.xlu0 %v364
    %v366 = vpop.xlane.xlu0 %365
    %v367 = vsel %vm300, %v290, inf
    %368 = vmin.xlane.f32.xlu0 %v367
    %v369 = vpop.xlane.xlu0 %368
    %v370 = vsel %vm300, %v291, inf
    %371 = vmin.xlane.f32.xlu0 %v370
    %v372 = vpop.xlane.xlu0 %371
    %v373 = vsel %vm300, %v292, inf
    %374 = vmin.xlane.f32.xlu0 %v373
    %v375 = vpop.xlane.xlu0 %374
    %v376 = vsel %vm300, %v293, inf
    %377 = vmin.xlane.f32.xlu0 %v376
    %v378 = vpop.xlane.xlu0 %377
    %v379 = vsel %vm300, %v294, inf
    %380 = vmin.xlane.f32.xlu0 %v379
    %v381 = vpop.xlane.xlu0 %380
    %v382 = vsel %vm300, %v295, inf
    %383 = vmin.xlane.f32.xlu0 %v382
    %v384 = vpop.xlane.xlu0 %383
    %v385 = vsel %vm300, %v296, inf
    %386 = vmin.xlane.f32.xlu0 %v385
    %v387 = vpop.xlane.xlu0 %386
    %v388 = vsel %vm300, %v297, inf
    %389 = vmin.xlane.f32.xlu0 %v388
    %v390 = vpop.xlane.xlu0 %389
    %v391 = vsel %vm300, %v298, inf
    %392 = vmin.xlane.f32.xlu0 %v391
    %v393 = vpop.xlane.xlu0 %392
    %v394 = vsel %vm300, %v299, inf
    %395 = vmin.xlane.f32.xlu0 %v394
    %v396 = vpop.xlane.xlu0 %395
    %v397 = vsub.f32 %v303, %v351
    %v398 = vsub.f32 %v306, %v354
    %v399 = vsub.f32 %v309, %v357
    %v400 = vsub.f32 %v312, %v360
    %v401 = vsub.f32 %v315, %v363
    %v402 = vsub.f32 %v318, %v366
    %v403 = vsub.f32 %v321, %v369
    %v404 = vsub.f32 %v324, %v372
    %v405 = vsub.f32 %v327, %v375
    %v406 = vsub.f32 %v330, %v378
    %v407 = vsub.f32 %v333, %v381
    %v408 = vsub.f32 %v336, %v384
    %v409 = vsub.f32 %v339, %v387
    %v410 = vsub.f32 %v342, %v390
    %v411 = vsub.f32 %v345, %v393
    %v412 = vsub.f32 %v348, %v396
    %vm413 = vcmp.eq.f32.partialorder %v397, 0.0
    %vm414 = vcmp.eq.f32.partialorder %v398, 0.0
    %vm415 = vcmp.eq.f32.partialorder %v399, 0.0
    %vm416 = vcmp.eq.f32.partialorder %v400, 0.0
    %vm417 = vcmp.eq.f32.partialorder %v401, 0.0
    %vm418 = vcmp.eq.f32.partialorder %v402, 0.0
    %vm419 = vcmp.eq.f32.partialorder %v403, 0.0
    %vm420 = vcmp.eq.f32.partialorder %v404, 0.0
    %vm421 = vcmp.eq.f32.partialorder %v405, 0.0
    %vm422 = vcmp.eq.f32.partialorder %v406, 0.0
    %vm423 = vcmp.eq.f32.partialorder %v407, 0.0
    %vm424 = vcmp.eq.f32.partialorder %v408, 0.0
    %vm425 = vcmp.eq.f32.partialorder %v409, 0.0
    %vm426 = vcmp.eq.f32.partialorder %v410, 0.0
    %vm427 = vcmp.eq.f32.partialorder %v411, 0.0
    %vm428 = vcmp.eq.f32.partialorder %v412, 0.0
    %v429 = vsel %vm413, 1.0, %v397
    %v430 = vsel %vm414, 1.0, %v398
    %v431 = vsel %vm415, 1.0, %v399
    %v432 = vsel %vm416, 1.0, %v400
    %v433 = vsel %vm417, 1.0, %v401
    %v434 = vsel %vm418, 1.0, %v402
    %v435 = vsel %vm419, 1.0, %v403
    %v436 = vsel %vm420, 1.0, %v404
    %v437 = vsel %vm421, 1.0, %v405
    %v438 = vsel %vm422, 1.0, %v406
    %v439 = vsel %vm423, 1.0, %v407
    %v440 = vsel %vm424, 1.0, %v408
    %v441 = vsel %vm425, 1.0, %v409
    %v442 = vsel %vm426, 1.0, %v410
    %v443 = vsel %vm427, 1.0, %v411
    %v444 = vsel %vm428, 1.0, %v412
    %v445 = vsub.f32 %v284, %v351
    %v446 = vsub.f32 %v285, %v354
    %v447 = vsub.f32 %v286, %v357
    %v448 = vsub.f32 %v287, %v360
    %v449 = vsub.f32 %v288, %v363
    %v450 = vsub.f32 %v289, %v366
    %v451 = vsub.f32 %v290, %v369
    %v452 = vsub.f32 %v291, %v372
    %v453 = vsub.f32 %v292, %v375
    %v454 = vsub.f32 %v293, %v378
    %v455 = vsub.f32 %v294, %v381
    %v456 = vsub.f32 %v295, %v384
    %v457 = vsub.f32 %v296, %v387
    %v458 = vsub.f32 %v297, %v390
    %v459 = vsub.f32 %v298, %v393
    %v460 = vsub.f32 %v299, %v396
    %v461 = vrcp.pop %v429
    %v462 = vmul.f32 %v445, %v461
    %v463 = vrcp.pop %v430
    %v464 = vmul.f32 %v446, %v463
    %v465 = vrcp.pop %v431
    %v466 = vmul.f32 %v447, %v465
    %v467 = vrcp.pop %v432
    %v468 = vmul.f32 %v448, %v467
    %v469 = vrcp.pop %v433
    %v470 = vmul.f32 %v449, %v469
    %v471 = vrcp.pop %v434
    %v472 = vmul.f32 %v450, %v471
    %v473 = vrcp.pop %v435
    %v474 = vmul.f32 %v451, %v473
    %v475 = vrcp.pop %v436
    %v476 = vmul.f32 %v452, %v475
    %v477 = vrcp.pop %v437
    %v478 = vmul.f32 %v453, %v477
    %v479 = vrcp.pop %v438
    %v480 = vmul.f32 %v454, %v479
    %v481 = vrcp.pop %v439
    %v482 = vmul.f32 %v455, %v481
    %v483 = vrcp.pop %v440
    %v484 = vmul.f32 %v456, %v483
    %v485 = vrcp.pop %v441
    %v486 = vmul.f32 %v457, %v485
    %v487 = vrcp.pop %v442
    %v488 = vmul.f32 %v458, %v487
    %v489 = vrcp.pop %v443
    %v490 = vmul.f32 %v459, %v489
    %v491 = vrcp.pop %v444
    %v492 = vmul.f32 %v460, %v491
    %v493 = vrcp.pop %v284
    %v494 = vmul.f32 %v462, %v493
    %v495 = vrcp.pop %v285
    %v496 = vmul.f32 %v464, %v495
    %v497 = vrcp.pop %v286
    %v498 = vmul.f32 %v466, %v497
    %v499 = vrcp.pop %v287
    %v500 = vmul.f32 %v468, %v499
    %v501 = vrcp.pop %v288
    %v502 = vmul.f32 %v470, %v501
    %v503 = vrcp.pop %v289
    %v504 = vmul.f32 %v472, %v503
    %v505 = vrcp.pop %v290
    %v506 = vmul.f32 %v474, %v505
    %v507 = vrcp.pop %v291
    %v508 = vmul.f32 %v476, %v507
    %v509 = vrcp.pop %v292
    %v510 = vmul.f32 %v478, %v509
    %v511 = vrcp.pop %v293
    %v512 = vmul.f32 %v480, %v511
    %v513 = vrcp.pop %v294
    %v514 = vmul.f32 %v482, %v513
    %v515 = vrcp.pop %v295
    %v516 = vmul.f32 %v484, %v515
    %v517 = vrcp.pop %v296
    %v518 = vmul.f32 %v486, %v517
    %v519 = vrcp.pop %v297
    %v520 = vmul.f32 %v488, %v519
    %v521 = vrcp.pop %v298
    %v522 = vmul.f32 %v490, %v521
    %v523 = vrcp.pop %v299
    %v524 = vmul.f32 %v492, %v523
    %v525 = vmul.f32 %v494, %v26
    %v526 = vmul.f32 %v496, %v26
    %v527 = vmul.f32 %v498, %v26
    %v528 = vmul.f32 %v500, %v26
    %v529 = vmul.f32 %v502, %v26
    %v530 = vmul.f32 %v504, %v26
    %v531 = vmul.f32 %v506, %v26
    %v532 = vmul.f32 %v508, %v26
    %v533 = vmul.f32 %v510, %v26
    %v534 = vmul.f32 %v512, %v26
    %v535 = vmul.f32 %v514, %v26
    %v536 = vmul.f32 %v516, %v26
    %v537 = vmul.f32 %v518, %v26
    %v538 = vmul.f32 %v520, %v26
    %v539 = vmul.f32 %v522, %v26
    %v540 = vmul.f32 %v524, %v26
    %v541 = vlaneseq
    %v542 = vshrl.u32 %v541, 7
    %v543 = vsub.s32 0, %v542
    %v544 = vrot.slane %v525, %v543
    %v545 = vlaneseq
    %v546 = vshrl.u32 %v545, 7
    %v547 = vsub.s32 0, %v546
    %v548 = vrot.slane %v526, %v547
    %v549 = vlaneseq
    %v550 = vshrl.u32 %v549, 7
    %v551 = vsub.s32 0, %v550
    %v552 = vrot.slane %v527, %v551
    %v553 = vlaneseq
    %v554 = vshrl.u32 %v553, 7
    %v555 = vsub.s32 0, %v554
    %v556 = vrot.slane %v528, %v555
    %v557 = vlaneseq
    %v558 = vshrl.u32 %v557, 7
    %v559 = vsub.s32 0, %v558
    %v560 = vrot.slane %v529, %v559
    %v561 = vlaneseq
    %v562 = vshrl.u32 %v561, 7
    %v563 = vsub.s32 0, %v562
    %v564 = vrot.slane %v530, %v563
    %v565 = vlaneseq
    %v566 = vshrl.u32 %v565, 7
    %v567 = vsub.s32 0, %v566
    %v568 = vrot.slane %v531, %v567
    %v569 = vlaneseq
    %v570 = vshrl.u32 %v569, 7
    %v571 = vsub.s32 0, %v570
    %v572 = vrot.slane %v532, %v571
    %v573 = vlaneseq
    %v574 = vshrl.u32 %v573, 7
    %v575 = vsub.s32 0, %v574
    %v576 = vrot.slane %v533, %v575
    %v577 = vlaneseq
    %v578 = vshrl.u32 %v577, 7
    %v579 = vsub.s32 0, %v578
    %v580 = vrot.slane %v534, %v579
    %v581 = vlaneseq
    %v582 = vshrl.u32 %v581, 7
    %v583 = vsub.s32 0, %v582
    %v584 = vrot.slane %v535, %v583
    %v585 = vlaneseq
    %v586 = vshrl.u32 %v585, 7
    %v587 = vsub.s32 0, %v586
    %v588 = vrot.slane %v536, %v587
    %v589 = vlaneseq
    %v590 = vshrl.u32 %v589, 7
    %v591 = vsub.s32 0, %v590
    %v592 = vrot.slane %v537, %v591
    %v593 = vlaneseq
    %v594 = vshrl.u32 %v593, 7
    %v595 = vsub.s32 0, %v594
    %v596 = vrot.slane %v538, %v595
    %v597 = vlaneseq
    %v598 = vshrl.u32 %v597, 7
    %v599 = vsub.s32 0, %v598
    %v600 = vrot.slane %v539, %v599
    %v601 = vlaneseq
    %v602 = vshrl.u32 %v601, 7
    %v603 = vsub.s32 0, %v602
    %v604 = vrot.slane %v540, %v603
    %v605 = vmul.f32 %v27, %v544
    %v606 = vmul.f32 %v28, %v548
    %v607 = vmul.f32 %v29, %v552
    %v608 = vmul.f32 %v30, %v556
    %v609 = vmul.f32 %v31, %v560
    %v610 = vmul.f32 %v32, %v564
    %v611 = vmul.f32 %v33, %v568
    %v612 = vmul.f32 %v34, %v572
    %v613 = vmul.f32 %v35, %v576
    %v614 = vmul.f32 %v36, %v580
    %v615 = vmul.f32 %v37, %v584
    %v616 = vmul.f32 %v38, %v588
    %v617 = vmul.f32 %v39, %v592
    %v618 = vmul.f32 %v40, %v596
    %v619 = vmul.f32 %v41, %v600
    %v620 = vmul.f32 %v42, %v604
    %621 = vst.msk [vmem:[#allocation5] sm:$0x7] %vm59, %v605
    %622 = vst.msk [vmem:[#allocation5 + $0x8] sm:$0x7] %vm59, %v606
    %623 = vst.msk [vmem:[#allocation5 + $0x10] sm:$0x7] %vm59, %v607
    %624 = vst.msk [vmem:[#allocation5 + $0x18] sm:$0x7] %vm59, %v608
    %625 = vst.msk [vmem:[#allocation5 + $0x20] sm:$0x7] %vm59, %v609
    %626 = vst.msk [vmem:[#allocation5 + $0x28] sm:$0x7] %vm59, %v610
    %627 = vst.msk [vmem:[#allocation5 + $0x30] sm:$0x7] %vm59, %v611
    %628 = vst.msk [vmem:[#allocation5 + $0x38] sm:$0x7] %vm59, %v612
    %629 = vst.msk [vmem:[#allocation5 + $0x40] sm:$0x7] %vm59, %v613
    %630 = vst.msk [vmem:[#allocation5 + $0x48] sm:$0x7] %vm59, %v614
    %631 = vst.msk [vmem:[#allocation5 + $0x50] sm:$0x7] %vm59, %v615
    %632 = vst.msk [vmem:[#allocation5 + $0x58] sm:$0x7] %vm59, %v616
    %633 = vst.msk [vmem:[#allocation5 + $0x60] sm:$0x7] %vm59, %v617
    %634 = vst.msk [vmem:[#allocation5 + $0x68] sm:$0x7] %vm59, %v618
    %635 = vst.msk [vmem:[#allocation5 + $0x70] sm:$0x7] %vm59, %v619
    %636 = vst.msk [vmem:[#allocation5 + $0x78] sm:$0x7] %vm59, %v620
    %v637 = vld [vmem:[#allocation2 + $0x3] sm:$0x1f]
    %v638 = vld [vmem:[#allocation2 + $0xb] sm:$0x1f]
    %v639 = vld [vmem:[#allocation2 + $0x13] sm:$0x1f]
    %v640 = vld [vmem:[#allocation2 + $0x1b] sm:$0x1f]
    %v641 = vld [vmem:[#allocation2 + $0x23] sm:$0x1f]
    %v642 = vld [vmem:[#allocation2 + $0x2b] sm:$0x1f]
    %v643 = vld [vmem:[#allocation2 + $0x33] sm:$0x1f]
    %v644 = vld [vmem:[#allocation2 + $0x3b] sm:$0x1f]
    %v645 = vld [vmem:[#allocation2 + $0x43] sm:$0x1f]
    %v646 = vld [vmem:[#allocation2 + $0x4b] sm:$0x1f]
    %v647 = vld [vmem:[#allocation2 + $0x53] sm:$0x1f]
    %v648 = vld [vmem:[#allocation2 + $0x5b] sm:$0x1f]
    %v649 = vld [vmem:[#allocation2 + $0x63] sm:$0x1f]
    %v650 = vld [vmem:[#allocation2 + $0x6b] sm:$0x1f]
    %v651 = vld [vmem:[#allocation2 + $0x73] sm:$0x1f]
    %v652 = vld [vmem:[#allocation2 + $0x7b] sm:$0x1f]
    %v653 = vmul.f32 %v637, %v637
    %v654 = vmul.f32 %v638, %v638
    %v655 = vmul.f32 %v639, %v639
    %v656 = vmul.f32 %v640, %v640
    %v657 = vmul.f32 %v641, %v641
    %v658 = vmul.f32 %v642, %v642
    %v659 = vmul.f32 %v643, %v643
    %v660 = vmul.f32 %v644, %v644
    %v661 = vmul.f32 %v645, %v645
    %v662 = vmul.f32 %v646, %v646
    %v663 = vmul.f32 %v647, %v647
    %v664 = vmul.f32 %v648, %v648
    %v665 = vmul.f32 %v649, %v649
    %v666 = vmul.f32 %v650, %v650
    %v667 = vmul.f32 %v651, %v651
    %v668 = vmul.f32 %v652, %v652
    %vm669 = vcmask 258048
    %v670 = vsel %vm669, %v653, 0.0
    %v671 = vrot.slane %v670, 4
    %v672 = vadd.f32 %v670, %v671
    %v673 = vrot.slane %v672, 2
    %v674 = vadd.f32 %v672, %v673
    %v675 = vrot.slane %v674, 1
    %v676 = vadd.f32 %v674, %v675
    %v677 = vsel %vm669, %v654, 0.0
    %v678 = vrot.slane %v677, 4
    %v679 = vadd.f32 %v677, %v678
    %v680 = vrot.slane %v679, 2
    %v681 = vadd.f32 %v679, %v680
    %v682 = vrot.slane %v681, 1
    %v683 = vadd.f32 %v681, %v682
    %v684 = vsel %vm669, %v655, 0.0
    %v685 = vrot.slane %v684, 4
    %v686 = vadd.f32 %v684, %v685
    %v687 = vrot.slane %v686, 2
    %v688 = vadd.f32 %v686, %v687
    %v689 = vrot.slane %v688, 1
    %v690 = vadd.f32 %v688, %v689
    %v691 = vsel %vm669, %v656, 0.0
    %v692 = vrot.slane %v691, 4
    %v693 = vadd.f32 %v691, %v692
    %v694 = vrot.slane %v693, 2
    %v695 = vadd.f32 %v693, %v694
    %v696 = vrot.slane %v695, 1
    %v697 = vadd.f32 %v695, %v696
    %v698 = vsel %vm669, %v657, 0.0
    %v699 = vrot.slane %v698, 4
    %v700 = vadd.f32 %v698, %v699
    %v701 = vrot.slane %v700, 2
    %v702 = vadd.f32 %v700, %v701
    %v703 = vrot.slane %v702, 1
    %v704 = vadd.f32 %v702, %v703
    %v705 = vsel %vm669, %v658, 0.0
    %v706 = vrot.slane %v705, 4
    %v707 = vadd.f32 %v705, %v706
    %v708 = vrot.slane %v707, 2
    %v709 = vadd.f32 %v707, %v708
    %v710 = vrot.slane %v709, 1
    %v711 = vadd.f32 %v709, %v710
    %v712 = vsel %vm669, %v659, 0.0
    %v713 = vrot.slane %v712, 4
    %v714 = vadd.f32 %v712, %v713
    %v715 = vrot.slane %v714, 2
    %v716 = vadd.f32 %v714, %v715
    %v717 = vrot.slane %v716, 1
    %v718 = vadd.f32 %v716, %v717
    %v719 = vsel %vm669, %v660, 0.0
    %v720 = vrot.slane %v719, 4
    %v721 = vadd.f32 %v719, %v720
    %v722 = vrot.slane %v721, 2
    %v723 = vadd.f32 %v721, %v722
    %v724 = vrot.slane %v723, 1
    %v725 = vadd.f32 %v723, %v724
    %v726 = vsel %vm669, %v661, 0.0
    %v727 = vrot.slane %v726, 4
    %v728 = vadd.f32 %v726, %v727
    %v729 = vrot.slane %v728, 2
    %v730 = vadd.f32 %v728, %v729
    %v731 = vrot.slane %v730, 1
    %v732 = vadd.f32 %v730, %v731
    %v733 = vsel %vm669, %v662, 0.0
    %v734 = vrot.slane %v733, 4
    %v735 = vadd.f32 %v733, %v734
    %v736 = vrot.slane %v735, 2
    %v737 = vadd.f32 %v735, %v736
    %v738 = vrot.slane %v737, 1
    %v739 = vadd.f32 %v737, %v738
    %v740 = vsel %vm669, %v663, 0.0
    %v741 = vrot.slane %v740, 4
    %v742 = vadd.f32 %v740, %v741
    %v743 = vrot.slane %v742, 2
    %v744 = vadd.f32 %v742, %v743
    %v745 = vrot.slane %v744, 1
    %v746 = vadd.f32 %v744, %v745
    %v747 = vsel %vm669, %v664, 0.0
    %v748 = vrot.slane %v747, 4
    %v749 = vadd.f32 %v747, %v748
    %v750 = vrot.slane %v749, 2
    %v751 = vadd.f32 %v749, %v750
    %v752 = vrot.slane %v751, 1
    %v753 = vadd.f32 %v751, %v752
    %v754 = vsel %vm669, %v665, 0.0
    %v755 = vrot.slane %v754, 4
    %v756 = vadd.f32 %v754, %v755
    %v757 = vrot.slane %v756, 2
    %v758 = vadd.f32 %v756, %v757
    %v759 = vrot.slane %v758, 1
    %v760 = vadd.f32 %v758, %v759
    %v761 = vsel %vm669, %v666, 0.0
    %v762 = vrot.slane %v761, 4
    %v763 = vadd.f32 %v761, %v762
    %v764 = vrot.slane %v763, 2
    %v765 = vadd.f32 %v763, %v764
    %v766 = vrot.slane %v765, 1
    %v767 = vadd.f32 %v765, %v766
    %v768 = vsel %vm669, %v667, 0.0
    %v769 = vrot.slane %v768, 4
    %v770 = vadd.f32 %v768, %v769
    %v771 = vrot.slane %v770, 2
    %v772 = vadd.f32 %v770, %v771
    %v773 = vrot.slane %v772, 1
    %v774 = vadd.f32 %v772, %v773
    %v775 = vsel %vm669, %v668, 0.0
    %v776 = vrot.slane %v775, 4
    %v777 = vadd.f32 %v775, %v776
    %v778 = vrot.slane %v777, 2
    %v779 = vadd.f32 %v777, %v778
    %v780 = vrot.slane %v779, 1
    %v781 = vadd.f32 %v779, %v780
    %v782 = vrsqrt.pop %v676
    %v783 = vmul.f32 %v676, %v782
    %vm784 = vcmp.eq.f32.partialorder %v676, inf
    %v785 = vsel %vm784, %v676, %v783
    %vm786 = vcmp.eq.f32.partialorder %v676, 0.0
    %v787 = vand.u32 %v676, 2147483648
    %v788 = vsel %vm786, %v787, %v785
    %v789 = vrsqrt.pop %v683
    %v790 = vmul.f32 %v683, %v789
    %vm791 = vcmp.eq.f32.partialorder %v683, inf
    %v792 = vsel %vm791, %v683, %v790
    %vm793 = vcmp.eq.f32.partialorder %v683, 0.0
    %v794 = vand.u32 %v683, 2147483648
    %v795 = vsel %vm793, %v794, %v792
    %v796 = vrsqrt.pop %v690
    %v797 = vmul.f32 %v690, %v796
    %vm798 = vcmp.eq.f32.partialorder %v690, inf
    %v799 = vsel %vm798, %v690, %v797
    %vm800 = vcmp.eq.f32.partialorder %v690, 0.0
    %v801 = vand.u32 %v690, 2147483648
    %v802 = vsel %vm800, %v801, %v799
    %v803 = vrsqrt.pop %v697
    %v804 = vmul.f32 %v697, %v803
    %vm805 = vcmp.eq.f32.partialorder %v697, inf
    %v806 = vsel %vm805, %v697, %v804
    %vm807 = vcmp.eq.f32.partialorder %v697, 0.0
    %v808 = vand.u32 %v697, 2147483648
    %v809 = vsel %vm807, %v808, %v806
    %v810 = vrsqrt.pop %v704
    %v811 = vmul.f32 %v704, %v810
    %vm812 = vcmp.eq.f32.partialorder %v704, inf
    %v813 = vsel %vm812, %v704, %v811
    %vm814 = vcmp.eq.f32.partialorder %v704, 0.0
    %v815 = vand.u32 %v704, 2147483648
    %v816 = vsel %vm814, %v815, %v813
    %v817 = vrsqrt.pop %v711
    %v818 = vmul.f32 %v711, %v817
    %vm819 = vcmp.eq.f32.partialorder %v711, inf
    %v820 = vsel %vm819, %v711, %v818
    %vm821 = vcmp.eq.f32.partialorder %v711, 0.0
    %v822 = vand.u32 %v711, 2147483648
    %v823 = vsel %vm821, %v822, %v820
    %v824 = vrsqrt.pop %v718
    %v825 = vmul.f32 %v718, %v824
    %vm826 = vcmp.eq.f32.partialorder %v718, inf
    %v827 = vsel %vm826, %v718, %v825
    %vm828 = vcmp.eq.f32.partialorder %v718, 0.0
    %v829 = vand.u32 %v718, 2147483648
    %v830 = vsel %vm828, %v829, %v827
    %v831 = vrsqrt.pop %v725
    %v832 = vmul.f32 %v725, %v831
    %vm833 = vcmp.eq.f32.partialorder %v725, inf
    %v834 = vsel %vm833, %v725, %v832
    %vm835 = vcmp.eq.f32.partialorder %v725, 0.0
    %v836 = vand.u32 %v725, 2147483648
    %v837 = vsel %vm835, %v836, %v834
    %v838 = vrsqrt.pop %v732
    %v839 = vmul.f32 %v732, %v838
    %vm840 = vcmp.eq.f32.partialorder %v732, inf
    %v841 = vsel %vm840, %v732, %v839
    %vm842 = vcmp.eq.f32.partialorder %v732, 0.0
    %v843 = vand.u32 %v732, 2147483648
    %v844 = vsel %vm842, %v843, %v841
    %v845 = vrsqrt.pop %v739
    %v846 = vmul.f32 %v739, %v845
    %vm847 = vcmp.eq.f32.partialorder %v739, inf
    %v848 = vsel %vm847, %v739, %v846
    %vm849 = vcmp.eq.f32.partialorder %v739, 0.0
    %v850 = vand.u32 %v739, 2147483648
    %v851 = vsel %vm849, %v850, %v848
    %v852 = vrsqrt.pop %v746
    %v853 = vmul.f32 %v746, %v852
    %vm854 = vcmp.eq.f32.partialorder %v746, inf
    %v855 = vsel %vm854, %v746, %v853
    %vm856 = vcmp.eq.f32.partialorder %v746, 0.0
    %v857 = vand.u32 %v746, 2147483648
    %v858 = vsel %vm856, %v857, %v855
    %v859 = vrsqrt.pop %v753
    %v860 = vmul.f32 %v753, %v859
    %vm861 = vcmp.eq.f32.partialorder %v753, inf
    %v862 = vsel %vm861, %v753, %v860
    %vm863 = vcmp.eq.f32.partialorder %v753, 0.0
    %v864 = vand.u32 %v753, 2147483648
    %v865 = vsel %vm863, %v864, %v862
    %v866 = vrsqrt.pop %v760
    %v867 = vmul.f32 %v760, %v866
    %vm868 = vcmp.eq.f32.partialorder %v760, inf
    %v869 = vsel %vm868, %v760, %v867
    %vm870 = vcmp.eq.f32.partialorder %v760, 0.0
    %v871 = vand.u32 %v760, 2147483648
    %v872 = vsel %vm870, %v871, %v869
    %v873 = vrsqrt.pop %v767
    %v874 = vmul.f32 %v767, %v873
    %vm875 = vcmp.eq.f32.partialorder %v767, inf
    %v876 = vsel %vm875, %v767, %v874
    %vm877 = vcmp.eq.f32.partialorder %v767, 0.0
    %v878 = vand.u32 %v767, 2147483648
    %v879 = vsel %vm877, %v878, %v876
    %v880 = vrsqrt.pop %v774
    %v881 = vmul.f32 %v774, %v880
    %vm882 = vcmp.eq.f32.partialorder %v774, inf
    %v883 = vsel %vm882, %v774, %v881
    %vm884 = vcmp.eq.f32.partialorder %v774, 0.0
    %v885 = vand.u32 %v774, 2147483648
    %v886 = vsel %vm884, %v885, %v883
    %v887 = vrsqrt.pop %v781
    %v888 = vmul.f32 %v781, %v887
    %vm889 = vcmp.eq.f32.partialorder %v781, inf
    %v890 = vsel %vm889, %v781, %v888
    %vm891 = vcmp.eq.f32.partialorder %v781, 0.0
    %v892 = vand.u32 %v781, 2147483648
    %v893 = vsel %vm891, %v892, %v890
    %v894 = vmax.f32 %v788, 1e-08
    %v895 = vmax.f32 %v795, 1e-08
    %v896 = vmax.f32 %v802, 1e-08
    %v897 = vmax.f32 %v809, 1e-08
    %v898 = vmax.f32 %v816, 1e-08
    %v899 = vmax.f32 %v823, 1e-08
    %v900 = vmax.f32 %v830, 1e-08
    %v901 = vmax.f32 %v837, 1e-08
    %v902 = vmax.f32 %v844, 1e-08
    %v903 = vmax.f32 %v851, 1e-08
    %v904 = vmax.f32 %v858, 1e-08
    %v905 = vmax.f32 %v865, 1e-08
    %v906 = vmax.f32 %v872, 1e-08
    %v907 = vmax.f32 %v879, 1e-08
    %v908 = vmax.f32 %v886, 1e-08
    %v909 = vmax.f32 %v893, 1e-08
    %v910 = vsel %vm300, %v894, -inf
    %911 = vmax.xlane.f32.xlu0 %v910
    %v912 = vpop.xlane.xlu0 %911
    %v913 = vsel %vm300, %v895, -inf
    %914 = vmax.xlane.f32.xlu0 %v913
    %v915 = vpop.xlane.xlu0 %914
    %v916 = vsel %vm300, %v896, -inf
    %917 = vmax.xlane.f32.xlu0 %v916
    %v918 = vpop.xlane.xlu0 %917
    %v919 = vsel %vm300, %v897, -inf
    %920 = vmax.xlane.f32.xlu0 %v919
    %v921 = vpop.xlane.xlu0 %920
    %v922 = vsel %vm300, %v898, -inf
    %923 = vmax.xlane.f32.xlu0 %v922
    %v924 = vpop.xlane.xlu0 %923
    %v925 = vsel %vm300, %v899, -inf
    %926 = vmax.xlane.f32.xlu0 %v925
    %v927 = vpop.xlane.xlu0 %926
    %v928 = vsel %vm300, %v900, -inf
    %929 = vmax.xlane.f32.xlu0 %v928
    %v930 = vpop.xlane.xlu0 %929
    %v931 = vsel %vm300, %v901, -inf
    %932 = vmax.xlane.f32.xlu0 %v931
    %v933 = vpop.xlane.xlu0 %932
    %v934 = vsel %vm300, %v902, -inf
    %935 = vmax.xlane.f32.xlu0 %v934
    %v936 = vpop.xlane.xlu0 %935
    %v937 = vsel %vm300, %v903, -inf
    %938 = vmax.xlane.f32.xlu0 %v937
    %v939 = vpop.xlane.xlu0 %938
    %v940 = vsel %vm300, %v904, -inf
    %941 = vmax.xlane.f32.xlu0 %v940
    %v942 = vpop.xlane.xlu0 %941
    %v943 = vsel %vm300, %v905, -inf
    %944 = vmax.xlane.f32.xlu0 %v943
    %v945 = vpop.xlane.xlu0 %944
    %v946 = vsel %vm300, %v906, -inf
    %947 = vmax.xlane.f32.xlu0 %v946
    %v948 = vpop.xlane.xlu0 %947
    %v949 = vsel %vm300, %v907, -inf
    %950 = vmax.xlane.f32.xlu0 %v949
    %v951 = vpop.xlane.xlu0 %950
    %v952 = vsel %vm300, %v908, -inf
    %953 = vmax.xlane.f32.xlu0 %v952
    %v954 = vpop.xlane.xlu0 %953
    %v955 = vsel %vm300, %v909, -inf
    %956 = vmax.xlane.f32.xlu0 %v955
    %v957 = vpop.xlane.xlu0 %956
    %v958 = vsel %vm300, %v894, inf
    %959 = vmin.xlane.f32.xlu0 %v958
    %v960 = vpop.xlane.xlu0 %959
    %v961 = vsel %vm300, %v895, inf
    %962 = vmin.xlane.f32.xlu0 %v961
    %v963 = vpop.xlane.xlu0 %962
    %v964 = vsel %vm300, %v896, inf
    %965 = vmin.xlane.f32.xlu0 %v964
    %v966 = vpop.xlane.xlu0 %965
    %v967 = vsel %vm300, %v897, inf
    %968 = vmin.xlane.f32.xlu0 %v967
    %v969 = vpop.xlane.xlu0 %968
    %v970 = vsel %vm300, %v898, inf
    %971 = vmin.xlane.f32.xlu0 %v970
    %v972 = vpop.xlane.xlu0 %971
    %v973 = vsel %vm300, %v899, inf
    %974 = vmin.xlane.f32.xlu0 %v973
    %v975 = vpop.xlane.xlu0 %974
    %v976 = vsel %vm300, %v900, inf
    %977 = vmin.xlane.f32.xlu0 %v976
    %v978 = vpop.xlane.xlu0 %977
    %v979 = vsel %vm300, %v901, inf
    %980 = vmin.xlane.f32.xlu0 %v979
    %v981 = vpop.xlane.xlu0 %980
    %v982 = vsel %vm300, %v902, inf
    %983 = vmin.xlane.f32.xlu0 %v982
    %v984 = vpop.xlane.xlu0 %983
    %v985 = vsel %vm300, %v903, inf
    %986 = vmin.xlane.f32.xlu0 %v985
    %v987 = vpop.xlane.xlu0 %986
    %v988 = vsel %vm300, %v904, inf
    %989 = vmin.xlane.f32.xlu0 %v988
    %v990 = vpop.xlane.xlu0 %989
    %v991 = vsel %vm300, %v905, inf
    %992 = vmin.xlane.f32.xlu0 %v991
    %v993 = vpop.xlane.xlu0 %992
    %v994 = vsel %vm300, %v906, inf
    %995 = vmin.xlane.f32.xlu0 %v994
    %v996 = vpop.xlane.xlu0 %995
    %v997 = vsel %vm300, %v907, inf
    %998 = vmin.xlane.f32.xlu0 %v997
    %v999 = vpop.xlane.xlu0 %998
    %v1000 = vsel %vm300, %v908, inf
    %1001 = vmin.xlane.f32.xlu0 %v1000
    %v1002 = vpop.xlane.xlu0 %1001
    %v1003 = vsel %vm300, %v909, inf
    %1004 = vmin.xlane.f32.xlu0 %v1003
    %v1005 = vpop.xlane.xlu0 %1004
    %v1006 = vsub.f32 %v912, %v960
    %v1007 = vsub.f32 %v915, %v963
    %v1008 = vsub.f32 %v918, %v966
    %v1009 = vsub.f32 %v921, %v969
    %v1010 = vsub.f32 %v924, %v972
    %v1011 = vsub.f32 %v927, %v975
    %v1012 = vsub.f32 %v930, %v978
    %v1013 = vsub.f32 %v933, %v981
    %v1014 = vsub.f32 %v936, %v984
    %v1015 = vsub.f32 %v939, %v987
    %v1016 = vsub.f32 %v942, %v990
    %v1017 = vsub.f32 %v945, %v993
    %v1018 = vsub.f32 %v948, %v996
    %v1019 = vsub.f32 %v951, %v999
    %v1020 = vsub.f32 %v954, %v1002
    %v1021 = vsub.f32 %v957, %v1005
    %vm1022 = vcmp.eq.f32.partialorder %v1006, 0.0
    %vm1023 = vcmp.eq.f32.partialorder %v1007, 0.0
    %vm1024 = vcmp.eq.f32.partialorder %v1008, 0.0
    %vm1025 = vcmp.eq.f32.partialorder %v1009, 0.0
    %vm1026 = vcmp.eq.f32.partialorder %v1010, 0.0
    %vm1027 = vcmp.eq.f32.partialorder %v1011, 0.0
    %vm1028 = vcmp.eq.f32.partialorder %v1012, 0.0
    %vm1029 = vcmp.eq.f32.partialorder %v1013, 0.0
    %vm1030 = vcmp.eq.f32.partialorder %v1014, 0.0
    %vm1031 = vcmp.eq.f32.partialorder %v1015, 0.0
    %vm1032 = vcmp.eq.f32.partialorder %v1016, 0.0
    %vm1033 = vcmp.eq.f32.partialorder %v1017, 0.0
    %vm1034 = vcmp.eq.f32.partialorder %v1018, 0.0
    %vm1035 = vcmp.eq.f32.partialorder %v1019, 0.0
    %vm1036 = vcmp.eq.f32.partialorder %v1020, 0.0
    %vm1037 = vcmp.eq.f32.partialorder %v1021, 0.0
    %v1038 = vsel %vm1022, 1.0, %v1006
    %v1039 = vsel %vm1023, 1.0, %v1007
    %v1040 = vsel %vm1024, 1.0, %v1008
    %v1041 = vsel %vm1025, 1.0, %v1009
    %v1042 = vsel %vm1026, 1.0, %v1010
    %v1043 = vsel %vm1027, 1.0, %v1011
    %v1044 = vsel %vm1028, 1.0, %v1012
    %v1045 = vsel %vm1029, 1.0, %v1013
    %v1046 = vsel %vm1030, 1.0, %v1014
    %v1047 = vsel %vm1031, 1.0, %v1015
    %v1048 = vsel %vm1032, 1.0, %v1016
    %v1049 = vsel %vm1033, 1.0, %v1017
    %v1050 = vsel %vm1034, 1.0, %v1018
    %v1051 = vsel %vm1035, 1.0, %v1019
    %v1052 = vsel %vm1036, 1.0, %v1020
    %v1053 = vsel %vm1037, 1.0, %v1021
    %v1054 = vsub.f32 %v894, %v960
    %v1055 = vsub.f32 %v895, %v963
    %v1056 = vsub.f32 %v896, %v966
    %v1057 = vsub.f32 %v897, %v969
    %v1058 = vsub.f32 %v898, %v972
    %v1059 = vsub.f32 %v899, %v975
    %v1060 = vsub.f32 %v900, %v978
    %v1061 = vsub.f32 %v901, %v981
    %v1062 = vsub.f32 %v902, %v984
    %v1063 = vsub.f32 %v903, %v987
    %v1064 = vsub.f32 %v904, %v990
    %v1065 = vsub.f32 %v905, %v993
    %v1066 = vsub.f32 %v906, %v996
    %v1067 = vsub.f32 %v907, %v999
    %v1068 = vsub.f32 %v908, %v1002
    %v1069 = vsub.f32 %v909, %v1005
    %v1070 = vrcp.pop %v1038
    %v1071 = vmul.f32 %v1054, %v1070
    %v1072 = vrcp.pop %v1039
    %v1073 = vmul.f32 %v1055, %v1072
    %v1074 = vrcp.pop %v1040
    %v1075 = vmul.f32 %v1056, %v1074
    %v1076 = vrcp.pop %v1041
    %v1077 = vmul.f32 %v1057, %v1076
    %v1078 = vrcp.pop %v1042
    %v1079 = vmul.f32 %v1058, %v1078
    %v1080 = vrcp.pop %v1043
    %v1081 = vmul.f32 %v1059, %v1080
    %v1082 = vrcp.pop %v1044
    %v1083 = vmul.f32 %v1060, %v1082
    %v1084 = vrcp.pop %v1045
    %v1085 = vmul.f32 %v1061, %v1084
    %v1086 = vrcp.pop %v1046
    %v1087 = vmul.f32 %v1062, %v1086
    %v1088 = vrcp.pop %v1047
    %v1089 = vmul.f32 %v1063, %v1088
    %v1090 = vrcp.pop %v1048
    %v1091 = vmul.f32 %v1064, %v1090
    %v1092 = vrcp.pop %v1049
    %v1093 = vmul.f32 %v1065, %v1092
    %v1094 = vrcp.pop %v1050
    %v1095 = vmul.f32 %v1066, %v1094
    %v1096 = vrcp.pop %v1051
    %v1097 = vmul.f32 %v1067, %v1096
    %v1098 = vrcp.pop %v1052
    %v1099 = vmul.f32 %v1068, %v1098
    %v1100 = vrcp.pop %v1053
    %v1101 = vmul.f32 %v1069, %v1100
    %v1102 = vrcp.pop %v894
    %v1103 = vmul.f32 %v1071, %v1102
    %v1104 = vrcp.pop %v895
    %v1105 = vmul.f32 %v1073, %v1104
    %v1106 = vrcp.pop %v896
    %v1107 = vmul.f32 %v1075, %v1106
    %v1108 = vrcp.pop %v897
    %v1109 = vmul.f32 %v1077, %v1108
    %v1110 = vrcp.pop %v898
    %v1111 = vmul.f32 %v1079, %v1110
    %v1112 = vrcp.pop %v899
    %v1113 = vmul.f32 %v1081, %v1112
    %v1114 = vrcp.pop %v900
    %v1115 = vmul.f32 %v1083, %v1114
    %v1116 = vrcp.pop %v901
    %v1117 = vmul.f32 %v1085, %v1116
    %v1118 = vrcp.pop %v902
    %v1119 = vmul.f32 %v1087, %v1118
    %v1120 = vrcp.pop %v903
    %v1121 = vmul.f32 %v1089, %v1120
    %v1122 = vrcp.pop %v904
    %v1123 = vmul.f32 %v1091, %v1122
    %v1124 = vrcp.pop %v905
    %v1125 = vmul.f32 %v1093, %v1124
    %v1126 = vrcp.pop %v906
    %v1127 = vmul.f32 %v1095, %v1126
    %v1128 = vrcp.pop %v907
    %v1129 = vmul.f32 %v1097, %v1128
    %v1130 = vrcp.pop %v908
    %v1131 = vmul.f32 %v1099, %v1130
    %v1132 = vrcp.pop %v909
    %v1133 = vmul.f32 %v1101, %v1132
    %v1134 = vmul.f32 %v1103, %v26
    %v1135 = vmul.f32 %v1105, %v26
    %v1136 = vmul.f32 %v1107, %v26
    %v1137 = vmul.f32 %v1109, %v26
    %v1138 = vmul.f32 %v1111, %v26
    %v1139 = vmul.f32 %v1113, %v26
    %v1140 = vmul.f32 %v1115, %v26
    %v1141 = vmul.f32 %v1117, %v26
    %v1142 = vmul.f32 %v1119, %v26
    %v1143 = vmul.f32 %v1121, %v26
    %v1144 = vmul.f32 %v1123, %v26
    %v1145 = vmul.f32 %v1125, %v26
    %v1146 = vmul.f32 %v1127, %v26
    %v1147 = vmul.f32 %v1129, %v26
    %v1148 = vmul.f32 %v1131, %v26
    %v1149 = vmul.f32 %v1133, %v26
    %v1150 = vlaneseq
    %v1151 = vshrl.u32 %v1150, 7
    %v1152 = vsub.s32 0, %v1151
    %v1153 = vrot.slane %v1134, %v1152
    %v1154 = vlaneseq
    %v1155 = vshrl.u32 %v1154, 7
    %v1156 = vsub.s32 0, %v1155
    %v1157 = vrot.slane %v1135, %v1156
    %v1158 = vlaneseq
    %v1159 = vshrl.u32 %v1158, 7
    %v1160 = vsub.s32 0, %v1159
    %v1161 = vrot.slane %v1136, %v1160
    %v1162 = vlaneseq
    %v1163 = vshrl.u32 %v1162, 7
    %v1164 = vsub.s32 0, %v1163
    %v1165 = vrot.slane %v1137, %v1164
    %v1166 = vlaneseq
    %v1167 = vshrl.u32 %v1166, 7
    %v1168 = vsub.s32 0, %v1167
    %v1169 = vrot.slane %v1138, %v1168
    %v1170 = vlaneseq
    %v1171 = vshrl.u32 %v1170, 7
    %v1172 = vsub.s32 0, %v1171
    %v1173 = vrot.slane %v1139, %v1172
    %v1174 = vlaneseq
    %v1175 = vshrl.u32 %v1174, 7
    %v1176 = vsub.s32 0, %v1175
    %v1177 = vrot.slane %v1140, %v1176
    %v1178 = vlaneseq
    %v1179 = vshrl.u32 %v1178, 7
    %v1180 = vsub.s32 0, %v1179
    %v1181 = vrot.slane %v1141, %v1180
    %v1182 = vlaneseq
    %v1183 = vshrl.u32 %v1182, 7
    %v1184 = vsub.s32 0, %v1183
    %v1185 = vrot.slane %v1142, %v1184
    %v1186 = vlaneseq
    %v1187 = vshrl.u32 %v1186, 7
    %v1188 = vsub.s32 0, %v1187
    %v1189 = vrot.slane %v1143, %v1188
    %v1190 = vlaneseq
    %v1191 = vshrl.u32 %v1190, 7
    %v1192 = vsub.s32 0, %v1191
    %v1193 = vrot.slane %v1144, %v1192
    %v1194 = vlaneseq
    %v1195 = vshrl.u32 %v1194, 7
    %v1196 = vsub.s32 0, %v1195
    %v1197 = vrot.slane %v1145, %v1196
    %v1198 = vlaneseq
    %v1199 = vshrl.u32 %v1198, 7
    %v1200 = vsub.s32 0, %v1199
    %v1201 = vrot.slane %v1146, %v1200
    %v1202 = vlaneseq
    %v1203 = vshrl.u32 %v1202, 7
    %v1204 = vsub.s32 0, %v1203
    %v1205 = vrot.slane %v1147, %v1204
    %v1206 = vlaneseq
    %v1207 = vshrl.u32 %v1206, 7
    %v1208 = vsub.s32 0, %v1207
    %v1209 = vrot.slane %v1148, %v1208
    %v1210 = vlaneseq
    %v1211 = vshrl.u32 %v1210, 7
    %v1212 = vsub.s32 0, %v1211
    %v1213 = vrot.slane %v1149, %v1212
    %v1214 = vmul.f32 %v637, %v1153
    %v1215 = vmul.f32 %v638, %v1157
    %v1216 = vmul.f32 %v639, %v1161
    %v1217 = vmul.f32 %v640, %v1165
    %v1218 = vmul.f32 %v641, %v1169
    %v1219 = vmul.f32 %v642, %v1173
    %v1220 = vmul.f32 %v643, %v1177
    %v1221 = vmul.f32 %v644, %v1181
    %v1222 = vmul.f32 %v645, %v1185
    %v1223 = vmul.f32 %v646, %v1189
    %v1224 = vmul.f32 %v647, %v1193
    %v1225 = vmul.f32 %v648, %v1197
    %v1226 = vmul.f32 %v649, %v1201
    %v1227 = vmul.f32 %v650, %v1205
    %v1228 = vmul.f32 %v651, %v1209
    %v1229 = vmul.f32 %v652, %v1213
    %1230 = vst.msk [vmem:[#allocation5 + $0x3] sm:$0x1f] %vm669, %v1214
    %1231 = vst.msk [vmem:[#allocation5 + $0xb] sm:$0x1f] %vm669, %v1215
    %1232 = vst.msk [vmem:[#allocation5 + $0x13] sm:$0x1f] %vm669, %v1216
    %1233 = vst.msk [vmem:[#allocation5 + $0x1b] sm:$0x1f] %vm669, %v1217
    %1234 = vst.msk [vmem:[#allocation5 + $0x23] sm:$0x1f] %vm669, %v1218
    %1235 = vst.msk [vmem:[#allocation5 + $0x2b] sm:$0x1f] %vm669, %v1219
    %1236 = vst.msk [vmem:[#allocation5 + $0x33] sm:$0x1f] %vm669, %v1220
    %1237 = vst.msk [vmem:[#allocation5 + $0x3b] sm:$0x1f] %vm669, %v1221
    %1238 = vst.msk [vmem:[#allocation5 + $0x43] sm:$0x1f] %vm669, %v1222
    %1239 = vst.msk [vmem:[#allocation5 + $0x4b] sm:$0x1f] %vm669, %v1223
    %1240 = vst.msk [vmem:[#allocation5 + $0x53] sm:$0x1f] %vm669, %v1224
    %1241 = vst.msk [vmem:[#allocation5 + $0x5b] sm:$0x1f] %vm669, %v1225
    %1242 = vst.msk [vmem:[#allocation5 + $0x63] sm:$0x1f] %vm669, %v1226
    %1243 = vst.msk [vmem:[#allocation5 + $0x6b] sm:$0x1f] %vm669, %v1227
    %1244 = vst.msk [vmem:[#allocation5 + $0x73] sm:$0x1f] %vm669, %v1228
    %1245 = vst.msk [vmem:[#allocation5 + $0x7b] sm:$0x1f] %vm669, %v1229
    // Predicated region
    $region14: #{tpu_custom_call.1} parent=1 // pred_check
      _
    $region15: #{tpu_custom_call.1} parent=1 // pred_check_branch
      %1247 = sbr.rel (0) target = $region17
    $region16: #{tpu_custom_call.1} parent=1 // pred_region
      %s1249 = ssub.s32 2048, 2048
      %1250 = vsyncadd [#allocation4], %s1249
      %s1251 = sshll.u32 [#allocation5], 4
      %s1252 = int_to_ptr.vmem [resolvable:$true] %s1251
      %1257 = dma.vmem_to_hbm [thread:$0]  %s1252, 2048, %s2, [#allocation4], 128, 128, 8
    $region17: #{tpu_custom_call.1} parent=1 // pred_fallthru
      _
    // Predicated region
    $region18: #{tpu_custom_call.1} parent=1 // pred_check
      _
    $region19: #{tpu_custom_call.1} parent=1 // pred_check_branch
      %1259 = sbr.rel (0) target = $region21
    $region20: #{tpu_custom_call.1} parent=1 // pred_region
      %1260 = dma.done [#allocation4], 2048
    $region21: #{tpu_custom_call.1} parent=1 // pred_fallthru
      _
    %1261 = vsyncpa [#allocation3], 1
    %1262 = vsyncpa [#allocation4], 1

</llo_original>
